<compile_context>
chip_gen: v7x
topology: tpu7x:2x2x1
jax: 0.10.0
libtpu: 0.0.40
codegen_flags: <defaults>
</compile_context>

<pallas_src>
import functools

import jax
import jax.numpy as jnp
from jax.experimental import pallas as pl
from jax.experimental.pallas import tpu as pltpu


# ---------------------------------------------------------------------------
# Hardware-aware budgets & tiling helpers
# ---------------------------------------------------------------------------
def _vmem_capacity_bytes():
    try:
        return int(pltpu.get_tpu_info().vmem_capacity_bytes)
    except Exception:
        return 64 * 2**20  # v7x-safe conservative fallback


def _vmem_budget_bytes():
    # ~3/4 of physical VMEM: ~48 MiB on v7x (64 MiB), ~96 MiB on v5e/v6e (128 MiB).
    return (_vmem_capacity_bytes() * 3) // 4


def _vmem_limit_bytes(working_set_bytes):
    """Explicit scoped-VMEM limit; never below the actual working set."""
    phys = _vmem_capacity_bytes()
    limit = min(max(working_set_bytes + 8 * 2**20, 32 * 2**20), phys - 4 * 2**20)
    return int(max(limit, working_set_bytes + 2 * 2**20))


def _sublane_align(*dtypes):
    """Sublane (second-minor) alignment required by the dtypes involved."""
    return max(8 * max(1, 4 // jnp.dtype(d).itemsize) for d in dtypes)


def _pick_block(dim, target, align):
    """Full dim if <= target (always legal), else largest aligned divisor <= target."""
    if dim <= target:
        return dim
    cand = (target // align) * align
    while cand >= align:
        if dim % cand == 0:
            return cand
        cand -= align
    return dim


def _shrink_block(dim, cur, align):
    """Largest aligned divisor of `dim` that is <= cur // 2, or None."""
    target = cur // 2
    cand = (target // align) * align
    while cand >= align:
        if dim % cand == 0:
            return cand
        cand -= align
    return None


# ---------------------------------------------------------------------------
# Kernel 1: original_results = F.linear(x0, weight) = x0 @ weight.T
# weight stays in native (O, I) layout; contraction on the last dim of both
# (MXU trans-RHS, no transpose, no extra HBM traffic).
# ---------------------------------------------------------------------------
def _linear_dot(compute_dtype, x, w):
    if compute_dtype is not None:
        x = x.astype(compute_dtype)
        w = w.astype(compute_dtype)
    return jax.lax.dot_general(
        x, w, dimension_numbers=(((1,), (1,)), ((), ())),
        preferred_element_type=jnp.float32)


def _linear_kernel_direct(compute_dtype, x_ref, w_ref, o_ref):
    # Single K step: write the result straight to the output block.
    o_ref[...] = _linear_dot(compute_dtype, x_ref[...], w_ref[...]).astype(o_ref.dtype)


def _linear_kernel_accum_out(compute_dtype, x_ref, w_ref, o_ref):
    # Multi-K, f32 output: accumulate directly into the resident output block.
    @pl.when(pl.program_id(2) == 0)
    def _():
        o_ref[...] = jnp.zeros_like(o_ref)

    o_ref[...] += _linear_dot(compute_dtype, x_ref[...], w_ref[...])


def _linear_kernel_scratch(compute_dtype, x_ref, w_ref, o_ref, acc_ref):
    # Multi-K, non-f32 output: f32 scratch accumulator, cast on the last step.
    @pl.when(pl.program_id(2) == 0)
    def _():
        acc_ref[...] = jnp.zeros_like(acc_ref)

    acc_ref[...] += _linear_dot(compute_dtype, x_ref[...], w_ref[...])

    @pl.when(pl.program_id(2) == pl.num_programs(2) - 1)
    def _():
        o_ref[...] = acc_ref[...].astype(o_ref.dtype)


def evo_linear_original(x0, weight, *, out_dtype=None, compute_dtype=None,
                        tm_target=512, tn_target=512, tk_target=1024):
    B, I = x0.shape
    O, I2 = weight.shape
    assert I == I2, "weight must be (out_features, in_features)"
    out_dtype = jnp.dtype(out_dtype) if out_dtype is not None else jnp.dtype(x0.dtype)

    x_it = jnp.dtype(x0.dtype).itemsize
    w_it = jnp.dtype(weight.dtype).itemsize
    o_it = out_dtype.itemsize

    sub = _sublane_align(x0.dtype, weight.dtype, out_dtype)
    tm = _pick_block(B, tm_target, sub)     # sublane dim of x / out blocks
    tn = _pick_block(O, tn_target, 128)     # lane dim of out block (lane-dense)
    tk = _pick_block(I, tk_target, 128)     # lane dim of x / w blocks

    budget = _vmem_budget_bytes()

    def working(tm_, tn_, tk_):
        # double-buffered ins/outs + worst-case f32 scratch tile
        return 2 * (tm_ * tk_ * x_it + tn_ * tk_ * w_it + tm_ * tn_ * o_it) + tm_ * tn_ * 4

    # Shrink order: K first (no re-fetch penalty), then N (x0 re-read O//tn x),
    # then M (weight re-read B//tm x) last.
    while working(tm, tn, tk) > budget:
        shrunk = False
        for name, dim, cur, align in (("tk", I, tk, 128), ("tn", O, tn, 128),
                                      ("tm", B, tm, sub)):
            new = _shrink_block(dim, cur, align)
            if new is not None:
                if name == "tk":
                    tk = new
                elif name == "tn":
                    tn = new
                else:
                    tm = new
                shrunk = True
                break
        if not shrunk:
            break  # nothing left to shrink; vmem_limit_bytes still >= working set

    grid = (B // tm, O // tn, I // tk)
    nk = grid[2]

    if nk == 1:
        kernel = functools.partial(_linear_kernel_direct, compute_dtype)
        scratch = []
    elif out_dtype == jnp.float32:
        kernel = functools.partial(_linear_kernel_accum_out, compute_dtype)
        scratch = []
    else:
        kernel = functools.partial(_linear_kernel_scratch, compute_dtype)
        scratch = [pltpu.VMEM((tm, tn), jnp.float32)]

    return pl.pallas_call(
        kernel,
        out_shape=jax.ShapeDtypeStruct((B, O), out_dtype),
        grid_spec=pltpu.PrefetchScalarGridSpec(
            num_scalar_prefetch=0,
            grid=grid,
            in_specs=[
                pl.BlockSpec((tm, tk), lambda i, j, k: (i, k)),
                pl.BlockSpec((tn, tk), lambda i, j, k: (j, k)),
            ],
            out_specs=pl.BlockSpec((tm, tn), lambda i, j, k: (i, j)),
            scratch_shapes=scratch,
        ),
        compiler_params=pltpu.CompilerParams(
            dimension_semantics=("parallel", "parallel", "arbitrary"),
            vmem_limit_bytes=_vmem_limit_bytes(working(tm, tn, tk)),
        ),
    )(x0, weight)


# ---------------------------------------------------------------------------
# Kernel 2: mutation_results = einsum('pbi,poi->pbo', x1, offspring)
# HBM-bound at realistic EvoLinear batch sizes: offspring (pop, O, I) is the
# dominant stream, so tb = full batch keeps it single-pass, and per-step
# offspring tiles are kept large (>= ~4 MiB) to amortize grid-step overhead.
# ---------------------------------------------------------------------------
def _mutation_dot(compute_dtype, x, w):
    if compute_dtype is not None:
        x = x.astype(compute_dtype)
        w = w.astype(compute_dtype)
    # x: (Pt, tb, tk), w: (Pt, to, tk) -> (Pt, tb, to); batch dim 0, contract
    # last dims of both (native trans-RHS, no transpose).
    return jax.lax.dot_general(
        x, w, dimension_numbers=(((2,), (2,)), ((0,), (0,))),
        preferred_element_type=jnp.float32)


def _mutation_kernel_direct(compute_dtype, x_ref, off_ref, o_ref):
    o_ref[...] = _mutation_dot(compute_dtype, x_ref[...], off_ref[...]).astype(o_ref.dtype)


def _mutation_kernel_accum_out(compute_dtype, x_ref, off_ref, o_ref):
    @pl.when(pl.program_id(3) == 0)
    def _():
        o_ref[...] = jnp.zeros_like(o_ref)

    o_ref[...] += _mutation_dot(compute_dtype, x_ref[...], off_ref[...])


def _mutation_kernel_scratch(compute_dtype, x_ref, off_ref, o_ref, acc_ref):
    @pl.when(pl.program_id(3) == 0)
    def _():
        acc_ref[...] = jnp.zeros_like(acc_ref)

    acc_ref[...] += _mutation_dot(compute_dtype, x_ref[...], off_ref[...])

    @pl.when(pl.program_id(3) == pl.num_programs(3) - 1)
    def _():
        o_ref[...] = acc_ref[...].astype(o_ref.dtype)


def evo_linear_mutation(x1, offspring, *, out_dtype=None, compute_dtype=None,
                        pt_target=16, tb_target=None, to_target=512,
                        tk_target=512):
    P, B, I = x1.shape
    P2, O, I2 = offspring.shape
    assert P == P2 and I == I2, "offspring must be (pop, out_features, in_features)"
    out_dtype = jnp.dtype(out_dtype) if out_dtype is not None else jnp.dtype(x1.dtype)

    x_it = jnp.dtype(x1.dtype).itemsize
    w_it = jnp.dtype(offspring.dtype).itemsize
    o_it = out_dtype.itemsize

    sub = _sublane_align(x1.dtype, offspring.dtype, out_dtype)

    # Priority 1: tb = full batch -> offspring (whose index_map is independent
    # of b) streams from HBM exactly once.
    tb = B if tb_target is None else _pick_block(B, tb_target, sub)
    pt = _pick_block(P, pt_target, 1)       # population members per grid step
    to = _pick_block(O, to_target, 128)     # lane dim of out block (lane-dense)
    tk = _pick_block(I, tk_target, 128)     # lane dim of x / offspring blocks

    budget = _vmem_budget_bytes()

    def working(pt_, tb_, to_, tk_):
        return (2 * (pt_ * tb_ * tk_ * x_it + pt_ * to_ * tk_ * w_it
                     + pt_ * tb_ * to_ * o_it) + pt_ * tb_ * to_ * 4)

    # Shrink order never multiplies offspring traffic (tk/to/pt), tb last resort.
    while working(pt, tb, to, tk) > budget:
        shrunk = False
        for name, dim, cur, align in (("tk", I, tk, 128), ("to", O, to, 128),
                                      ("pt", P, pt, 1), ("tb", B, tb, sub)):
            new = _shrink_block(dim, cur, align)
            if new is not None:
                if name == "tk":
                    tk = new
                elif name == "to":
                    to = new
                elif name == "pt":
                    pt = new
                else:
                    tb = new
                shrunk = True
                break
        if not shrunk:
            break

    # Megacore (v7x = 2 TensorCores): guarantee >= 2 blocks along a parallel
    # grid axis so one core isn't idle. Split pop first, out_features otherwise.
    if (P // pt) * (B // tb) * (O // to) < 2:
        new_pt = _shrink_block(P, pt, 1)
        if new_pt is not None:
            pt = new_pt
        else:
            new_to = _shrink_block(O, to, 128)
            if new_to is not None:
                to = new_to

    grid = (P // pt, B // tb, O // to, I // tk)
    nk = grid[3]

    if nk == 1:
        kernel = functools.partial(_mutation_kernel_direct, compute_dtype)
        scratch = []
    elif out_dtype == jnp.float32:
        kernel = functools.partial(_mutation_kernel_accum_out, compute_dtype)
        scratch = []
    else:
        kernel = functools.partial(_mutation_kernel_scratch, compute_dtype)
        scratch = [pltpu.VMEM((pt, tb, to), jnp.float32)]

    return pl.pallas_call(
        kernel,
        out_shape=jax.ShapeDtypeStruct((P, B, O), out_dtype),
        grid_spec=pltpu.PrefetchScalarGridSpec(
            num_scalar_prefetch=0,
            grid=grid,
            in_specs=[
                pl.BlockSpec((pt, tb, tk), lambda p, b, o, k: (p, b, k)),
                pl.BlockSpec((pt, to, tk), lambda p, b, o, k: (p, o, k)),
            ],
            out_specs=pl.BlockSpec((pt, tb, to), lambda p, b, o, k: (p, b, o)),
            scratch_shapes=scratch,
        ),
        compiler_params=pltpu.CompilerParams(
            dimension_semantics=("parallel", "parallel", "parallel", "arbitrary"),
            vmem_limit_bytes=_vmem_limit_bytes(working(pt, tb, to, tk)),
        ),
    )(x1, offspring)


# ---------------------------------------------------------------------------
# Forward matching EvoLinear.forward: x is a list; returns a list.
# No wrapper-side dtype casts (they would add a full extra HBM pass over
# offspring); compute_dtype casts the loaded tiles inside the kernel body.
# TODO(synk): for real bandwidth savings on the mem-bound mutation kernel,
# store offspring in bf16 once per generation upstream (next_generation),
# not per forward call.
# ---------------------------------------------------------------------------
def evo_linear_forward(x, weight, offspring=None, *, compute_dtype=None):
    x0 = x[0]
    original_results = evo_linear_original(
        x0, weight, out_dtype=x0.dtype, compute_dtype=compute_dtype)

    if offspring is not None and len(x) > 1:
        x1 = x[1]
        mutation_results = evo_linear_mutation(
            x1, offspring, out_dtype=x1.dtype, compute_dtype=compute_dtype)
        return [original_results, mutation_results]
    return [original_results]


if __name__ == "__main__":
    # Small shapes consistent with the module; large enough (128-multiple lane
    # dims, multi-member population) to exercise real tiling.
    in_features = 512
    out_features = 256
    batch = 16
    pop = 16
    lr = 0.1

    key = jax.random.PRNGKey(0)
    k_w, k_off, k_x0, k_x1 = jax.random.split(key, 4)

    # register_buffer('weight', zeros(out, in)); small random values so the
    # test exercises real arithmetic (deterministic in-script init).
    weight = jax.random.normal(k_w, (out_features, in_features), jnp.float32) * 0.02
    # next_generation: offspring = normal(mean=weight broadcast to pop, std=lr)
    offspring = weight[None, :, :] + lr * jax.random.normal(
        k_off, (pop, out_features, in_features), jnp.float32)

    x0 = jax.random.normal(k_x0, (batch, in_features), jnp.float32)
    x1 = jax.random.normal(k_x1, (pop, batch, in_features), jnp.float32)

    ref0 = jnp.dot(x0, weight.T, precision=jax.lax.Precision.HIGHEST)
    ref1 = jnp.einsum("pbi,poi->pbo", x1, offspring,
                      precision=jax.lax.Precision.HIGHEST)

    # --- 1) default f32 path (single K step, direct-write kernels) ----------
    out = evo_linear_forward([x0, x1], weight, offspring)
    out = jax.block_until_ready(out)
    assert out[0].shape == (batch, out_features)
    assert out[1].shape == (pop, batch, out_features)
    assert jnp.allclose(out[0], ref0, atol=1e-3, rtol=1e-3)
    assert jnp.allclose(out[1], ref1, atol=1e-3, rtol=1e-3)

    # --- 2) multi-K, f32 output -> accumulate directly into output block ----
    o0_k = evo_linear_original(x0, weight, tk_target=128)
    o1_k = evo_linear_mutation(x1, offspring, tk_target=128)
    o0_k, o1_k = jax.block_until_ready((o0_k, o1_k))
    assert jnp.allclose(o0_k, ref0, atol=1e-3, rtol=1e-3)
    assert jnp.allclose(o1_k, ref1, atol=1e-3, rtol=1e-3)

    # --- 3) multi-K, bf16 output -> f32 scratch accumulator path ------------
    o1_bf_out = evo_linear_mutation(x1, offspring, out_dtype=jnp.bfloat16,
                                    tk_target=128)
    o1_bf_out = jax.block_until_ready(o1_bf_out)
    assert o1_bf_out.dtype == jnp.bfloat16
    assert jnp.allclose(o1_bf_out.astype(jnp.float32), ref1, atol=5e-2, rtol=5e-2)

    # --- 4) in-kernel bf16 compute cast (f32 accumulate, f32 output; no extra
    #        HBM pass over offspring) -----------------------------------------
    out_bf16 = evo_linear_forward([x0, x1], weight, offspring,
                                  compute_dtype=jnp.bfloat16)
    out_bf16 = jax.block_until_ready(out_bf16)
    assert out_bf16[0].dtype == jnp.float32
    assert jnp.allclose(out_bf16[0], ref0, atol=5e-2, rtol=5e-2)
    assert jnp.allclose(out_bf16[1], ref1, atol=5e-2, rtol=5e-2)

    # --- 5) offspring is None branch (matches module semantics) --------------
    out_single = evo_linear_forward([x0], weight, None)
    jax.block_until_ready(out_single)
    assert len(out_single) == 1 and out_single[0].shape == (batch, out_features)

    print("KERNEL_OK")
</pallas_src>

<mosaic_0001>
module attributes {stable_mosaic.version = 11 : i64} {
  func.func @_linear_kernel_direct(%arg0: i32, %arg1: i32, %arg2: i32, %arg3: memref<16x512xf32, #tpu.memory_space<vmem>>, %arg4: memref<256x512xf32, #tpu.memory_space<vmem>>, %arg5: memref<16x256xf32, #tpu.memory_space<vmem>>) attributes {dimension_semantics = [#tpu.dimension_semantics<parallel>, #tpu.dimension_semantics<parallel>, #tpu.dimension_semantics<arbitrary>], iteration_bounds = array<i64: 1, 1, 1>, scalar_prefetch = 0 : i64, scratch_operands = 0 : i64, tpu.core_type = #tpu.core_type<tc>, window_params = [{transform_indices = @transform_0, window_bounds = array<i64: 16, 512>}, {transform_indices = @transform_1, window_bounds = array<i64: 256, 512>}, {transform_indices = @transform_2, window_bounds = array<i64: 16, 256>}]} {
    %c0 = arith.constant 0 : index
    %c0_0 = arith.constant 0 : index
    %0 = vector.load %arg3[%c0, %c0_0] : memref<16x512xf32, #tpu.memory_space<vmem>>, vector<16x512xf32>
    %c0_1 = arith.constant 0 : index
    %c0_2 = arith.constant 0 : index
    %1 = vector.load %arg4[%c0_1, %c0_2] : memref<256x512xf32, #tpu.memory_space<vmem>>, vector<256x512xf32>
    %cst = arith.constant dense<0.000000e+00> : vector<16x256xf32>
    %2 = tpu.matmul %0, %1, %cst {dimension_numbers = #tpu.dot_dimension_numbers<[1], [1], [0], [0], [0, 0, 1, 0], [], []>} : vector<16x512xf32>, vector<256x512xf32>, vector<16x256xf32> -> vector<16x256xf32>
    %c0_3 = arith.constant 0 : index
    %c0_4 = arith.constant 0 : index
    %3 = vector.load %arg5[%c0_3, %c0_4] : memref<16x256xf32, #tpu.memory_space<vmem>>, vector<16x256xf32>
    tpu.vector_store %arg5[%c0_3, %c0_4], %2 {strides = array<i32>} : memref<16x256xf32, #tpu.memory_space<vmem>>, vector<16x256xf32>,
    return
  }
  func.func @transform_0(%arg0: i32, %arg1: i32, %arg2: i32) -> (i32, i32) {
    %c0_i32 = arith.constant 0 : i32
    return %arg0, %arg2 : i32, i32
  }
  func.func @transform_1(%arg0: i32, %arg1: i32, %arg2: i32) -> (i32, i32) {
    %c0_i32 = arith.constant 0 : i32
    return %arg1, %arg2 : i32, i32
  }
  func.func @transform_2(%arg0: i32, %arg1: i32, %arg2: i32) -> (i32, i32) {
    %c0_i32 = arith.constant 0 : i32
    return %arg0, %arg1 : i32, i32
  }
}

</mosaic_0001>

<llo_original>
// kernel: tpu_custom_call.1
$region0: #{tpu_custom_call.1}
  #allocation0 [shape = 'u32[]', space=smem, size = 0x4, offset = 0x4, fixed_abs, tag = 'smem constant byte address 0x4 - core index']
  #allocation1 [shape = 'u32[144,128]{1,0:T(1,128)}', space=vmem, size = 0x12000, scoped, tag = 'internal scratch']
  %s0 = inlined_call_operand.hbm [shape: f32[16,512], index: 0, kind: input, shape index: {}]
  %s1 = inlined_call_operand.hbm [shape: f32[256,512], index: 1, kind: input, shape index: {}]
  %s2 = inlined_call_operand.hbm [shape: f32[16,256], index: 2, kind: output, shape index: {}]
  %s3 = sld [smem:[#allocation0]]
  $region26: #{tpu_custom_call.1} parent=0
    _
  %s5 = ssub.s32 1, %s3
  %s6 = scalar_select 0, %s5, %s3
  $region1: #{tpu_custom_call.1} parent=0
    #allocation2 [shape = 'u8[32768]{0}', space=vmem, size = 0x8000, scoped, tag = 'input window, operand 0, single buffered']
    #allocation3 [shape = 's32[1]{0}', space=sflag, size = 0x4, scoped, tag = 'scoped memory for tpu_custom_call.1']
    #allocation4 [shape = 's32[1]{0}', space=sflag, size = 0x4, scoped, tag = 'scoped memory for tpu_custom_call.1']
    #allocation5 [shape = 'u8[524288]{0}', space=vmem, size = 0x80000, scoped, tag = 'input window, operand 1, single buffered']
    #allocation6 [shape = 's32[1]{0}', space=sflag, size = 0x4, scoped, tag = 'scoped memory for tpu_custom_call.1']
    #allocation7 [shape = 'u8[16384]{0}', space=vmem, size = 0x4000, scoped, tag = 'output window, operand 0, single buffered']
    %7 = vsyncpa [#allocation3], 0
    %8 = vsyncpa [#allocation6], 0
    %9 = vsyncpa [#allocation4], 0
    // Predicated region
    $region2: #{tpu_custom_call.1} parent=1 // pred_check
      _
    $region3: #{tpu_custom_call.1} parent=1 // pred_check_branch
      %11 = sbr.rel (0) target = $region5
    $region4: #{tpu_custom_call.1} parent=1 // pred_region
      %s13 = ssub.s32 1024, 1024
      %14 = vsyncadd [#allocation3], %s13
      %s15 = sshll.u32 [#allocation2], 4
      %s16 = int_to_ptr.vmem [resolvable:$true] %s15
      %21 = dma.hbm_to_vmem [thread:$0]  %s0, 1024, %s16, [#allocation3], 512, 512, 32
    $region5: #{tpu_custom_call.1} parent=1 // pred_fallthru
      _
    // Predicated region
    $region6: #{tpu_custom_call.1} parent=1 // pred_check
      _
    $region7: #{tpu_custom_call.1} parent=1 // pred_check_branch
      %23 = sbr.rel (0) target = $region9
    $region8: #{tpu_custom_call.1} parent=1 // pred_region
      %s25 = ssub.s32 16384, 16384
      %26 = vsyncadd [#allocation6], %s25
      %s27 = sshll.u32 [#allocation5], 4
      %s28 = int_to_ptr.vmem [resolvable:$true] %s27
      %33 = dma.hbm_to_vmem [thread:$0]  %s1, 16384, %s28, [#allocation6], 512, 512, 32
    $region9: #{tpu_custom_call.1} parent=1 // pred_fallthru
      _
    // Predicated region
    $region10: #{tpu_custom_call.1} parent=1 // pred_check
      _
    $region11: #{tpu_custom_call.1} parent=1 // pred_check_branch
      %35 = sbr.rel (0) target = $region13
    $region12: #{tpu_custom_call.1} parent=1 // pred_region
      %36 = dma.done [#allocation3], 1024
    $region13: #{tpu_custom_call.1} parent=1 // pred_fallthru
      _
    // Predicated region
    $region14: #{tpu_custom_call.1} parent=1 // pred_check
      _
    $region15: #{tpu_custom_call.1} parent=1 // pred_check_branch
      %38 = sbr.rel (0) target = $region17
    $region16: #{tpu_custom_call.1} parent=1 // pred_region
      %39 = dma.done [#allocation6], 16384
    $region17: #{tpu_custom_call.1} parent=1 // pred_fallthru
      _
    %v40 = vld [vmem:[#allocation2] sm:$0xff]
    %v41 = vld [vmem:[#allocation2 + $0x8] sm:$0xff]
    %v42 = vld [vmem:[#allocation2 + $0x10] sm:$0xff]
    %v43 = vld [vmem:[#allocation2 + $0x18] sm:$0xff]
    %v44 = vld [vmem:[#allocation2 + $0x20] sm:$0xff]
    %v45 = vld [vmem:[#allocation2 + $0x28] sm:$0xff]
    %v46 = vld [vmem:[#allocation2 + $0x30] sm:$0xff]
    %v47 = vld [vmem:[#allocation2 + $0x38] sm:$0xff]
    %v48 = vld [vmem:[#allocation5] sm:$0xff]
    %v49 = vld [vmem:[#allocation5 + $0x8] sm:$0xff]
    %v50 = vld [vmem:[#allocation5 + $0x10] sm:$0xff]
    %v51 = vld [vmem:[#allocation5 + $0x18] sm:$0xff]
    %v52 = vld [vmem:[#allocation5 + $0x20] sm:$0xff]
    %v53 = vld [vmem:[#allocation5 + $0x28] sm:$0xff]
    %v54 = vld [vmem:[#allocation5 + $0x30] sm:$0xff]
    %v55 = vld [vmem:[#allocation5 + $0x38] sm:$0xff]
    %v56 = vld [vmem:[#allocation5 + $0x40] sm:$0xff]
    %v57 = vld [vmem:[#allocation5 + $0x48] sm:$0xff]
    %v58 = vld [vmem:[#allocation5 + $0x50] sm:$0xff]
    %v59 = vld [vmem:[#allocation5 + $0x58] sm:$0xff]
    %v60 = vld [vmem:[#allocation5 + $0x60] sm:$0xff]
    %v61 = vld [vmem:[#allocation5 + $0x68] sm:$0xff]
    %v62 = vld [vmem:[#allocation5 + $0x70] sm:$0xff]
    %v63 = vld [vmem:[#allocation5 + $0x78] sm:$0xff]
    %v64 = vld [vmem:[#allocation5 + $0x80] sm:$0xff]
    %v65 = vld [vmem:[#allocation5 + $0x88] sm:$0xff]
    %v66 = vld [vmem:[#allocation5 + $0x90] sm:$0xff]
    %v67 = vld [vmem:[#allocation5 + $0x98] sm:$0xff]
    %v68 = vld [vmem:[#allocation5 + $0xa0] sm:$0xff]
    %v69 = vld [vmem:[#allocation5 + $0xa8] sm:$0xff]
    %v70 = vld [vmem:[#allocation5 + $0xb0] sm:$0xff]
    %v71 = vld [vmem:[#allocation5 + $0xb8] sm:$0xff]
    %v72 = vld [vmem:[#allocation5 + $0xc0] sm:$0xff]
    %v73 = vld [vmem:[#allocation5 + $0xc8] sm:$0xff]
    %v74 = vld [vmem:[#allocation5 + $0xd0] sm:$0xff]
    %v75 = vld [vmem:[#allocation5 + $0xd8] sm:$0xff]
    %v76 = vld [vmem:[#allocation5 + $0xe0] sm:$0xff]
    %v77 = vld [vmem:[#allocation5 + $0xe8] sm:$0xff]
    %v78 = vld [vmem:[#allocation5 + $0xf0] sm:$0xff]
    %v79 = vld [vmem:[#allocation5 + $0xf8] sm:$0xff]
    %v80 = vld [vmem:[#allocation5 + $0x100] sm:$0xff]
    %v81 = vld [vmem:[#allocation5 + $0x108] sm:$0xff]
    %v82 = vld [vmem:[#allocation5 + $0x110] sm:$0xff]
    %v83 = vld [vmem:[#allocation5 + $0x118] sm:$0xff]
    %v84 = vld [vmem:[#allocation5 + $0x120] sm:$0xff]
    %v85 = vld [vmem:[#allocation5 + $0x128] sm:$0xff]
    %v86 = vld [vmem:[#allocation5 + $0x130] sm:$0xff]
    %v87 = vld [vmem:[#allocation5 + $0x138] sm:$0xff]
    %v88 = vld [vmem:[#allocation5 + $0x140] sm:$0xff]
    %v89 = vld [vmem:[#allocation5 + $0x148] sm:$0xff]
    %v90 = vld [vmem:[#allocation5 + $0x150] sm:$0xff]
    %v91 = vld [vmem:[#allocation5 + $0x158] sm:$0xff]
    %v92 = vld [vmem:[#allocation5 + $0x160] sm:$0xff]
    %v93 = vld [vmem:[#allocation5 + $0x168] sm:$0xff]
    %v94 = vld [vmem:[#allocation5 + $0x170] sm:$0xff]
    %v95 = vld [vmem:[#allocation5 + $0x178] sm:$0xff]
    %v96 = vld [vmem:[#allocation5 + $0x180] sm:$0xff]
    %v97 = vld [vmem:[#allocation5 + $0x188] sm:$0xff]
    %v98 = vld [vmem:[#allocation5 + $0x190] sm:$0xff]
    %v99 = vld [vmem:[#allocation5 + $0x198] sm:$0xff]
    %v100 = vld [vmem:[#allocation5 + $0x1a0] sm:$0xff]
    %v101 = vld [vmem:[#allocation5 + $0x1a8] sm:$0xff]
    %v102 = vld [vmem:[#allocation5 + $0x1b0] sm:$0xff]
    %v103 = vld [vmem:[#allocation5 + $0x1b8] sm:$0xff]
    %v104 = vld [vmem:[#allocation5 + $0x1c0] sm:$0xff]
    %v105 = vld [vmem:[#allocation5 + $0x1c8] sm:$0xff]
    %v106 = vld [vmem:[#allocation5 + $0x1d0] sm:$0xff]
    %v107 = vld [vmem:[#allocation5 + $0x1d8] sm:$0xff]
    %v108 = vld [vmem:[#allocation5 + $0x1e0] sm:$0xff]
    %v109 = vld [vmem:[#allocation5 + $0x1e8] sm:$0xff]
    %v110 = vld [vmem:[#allocation5 + $0x1f0] sm:$0xff]
    %v111 = vld [vmem:[#allocation5 + $0x1f8] sm:$0xff]
    %v112 = vld [vmem:[#allocation5 + $0x200] sm:$0xff]
    %v113 = vld [vmem:[#allocation5 + $0x208] sm:$0xff]
    %v114 = vld [vmem:[#allocation5 + $0x210] sm:$0xff]
    %v115 = vld [vmem:[#allocation5 + $0x218] sm:$0xff]
    %v116 = vld [vmem:[#allocation5 + $0x220] sm:$0xff]
    %v117 = vld [vmem:[#allocation5 + $0x228] sm:$0xff]
    %v118 = vld [vmem:[#allocation5 + $0x230] sm:$0xff]
    %v119 = vld [vmem:[#allocation5 + $0x238] sm:$0xff]
    %v120 = vld [vmem:[#allocation5 + $0x240] sm:$0xff]
    %v121 = vld [vmem:[#allocation5 + $0x248] sm:$0xff]
    %v122 = vld [vmem:[#allocation5 + $0x250] sm:$0xff]
    %v123 = vld [vmem:[#allocation5 + $0x258] sm:$0xff]
    %v124 = vld [vmem:[#allocation5 + $0x260] sm:$0xff]
    %v125 = vld [vmem:[#allocation5 + $0x268] sm:$0xff]
    %v126 = vld [vmem:[#allocation5 + $0x270] sm:$0xff]
    %v127 = vld [vmem:[#allocation5 + $0x278] sm:$0xff]
    %v128 = vld [vmem:[#allocation5 + $0x280] sm:$0xff]
    %v129 = vld [vmem:[#allocation5 + $0x288] sm:$0xff]
    %v130 = vld [vmem:[#allocation5 + $0x290] sm:$0xff]
    %v131 = vld [vmem:[#allocation5 + $0x298] sm:$0xff]
    %v132 = vld [vmem:[#allocation5 + $0x2a0] sm:$0xff]
    %v133 = vld [vmem:[#allocation5 + $0x2a8] sm:$0xff]
    %v134 = vld [vmem:[#allocation5 + $0x2b0] sm:$0xff]
    %v135 = vld [vmem:[#allocation5 + $0x2b8] sm:$0xff]
    %v136 = vld [vmem:[#allocation5 + $0x2c0] sm:$0xff]
    %v137 = vld [vmem:[#allocation5 + $0x2c8] sm:$0xff]
    %v138 = vld [vmem:[#allocation5 + $0x2d0] sm:$0xff]
    %v139 = vld [vmem:[#allocation5 + $0x2d8] sm:$0xff]
    %v140 = vld [vmem:[#allocation5 + $0x2e0] sm:$0xff]
    %v141 = vld [vmem:[#allocation5 + $0x2e8] sm:$0xff]
    %v142 = vld [vmem:[#allocation5 + $0x2f0] sm:$0xff]
    %v143 = vld [vmem:[#allocation5 + $0x2f8] sm:$0xff]
    %v144 = vld [vmem:[#allocation5 + $0x300] sm:$0xff]
    %v145 = vld [vmem:[#allocation5 + $0x308] sm:$0xff]
    %v146 = vld [vmem:[#allocation5 + $0x310] sm:$0xff]
    %v147 = vld [vmem:[#allocation5 + $0x318] sm:$0xff]
    %v148 = vld [vmem:[#allocation5 + $0x320] sm:$0xff]
    %v149 = vld [vmem:[#allocation5 + $0x328] sm:$0xff]
    %v150 = vld [vmem:[#allocation5 + $0x330] sm:$0xff]
    %v151 = vld [vmem:[#allocation5 + $0x338] sm:$0xff]
    %v152 = vld [vmem:[#allocation5 + $0x340] sm:$0xff]
    %v153 = vld [vmem:[#allocation5 + $0x348] sm:$0xff]
    %v154 = vld [vmem:[#allocation5 + $0x350] sm:$0xff]
    %v155 = vld [vmem:[#allocation5 + $0x358] sm:$0xff]
    %v156 = vld [vmem:[#allocation5 + $0x360] sm:$0xff]
    %v157 = vld [vmem:[#allocation5 + $0x368] sm:$0xff]
    %v158 = vld [vmem:[#allocation5 + $0x370] sm:$0xff]
    %v159 = vld [vmem:[#allocation5 + $0x378] sm:$0xff]
    %v160 = vld [vmem:[#allocation5 + $0x380] sm:$0xff]
    %v161 = vld [vmem:[#allocation5 + $0x388] sm:$0xff]
    %v162 = vld [vmem:[#allocation5 + $0x390] sm:$0xff]
    %v163 = vld [vmem:[#allocation5 + $0x398] sm:$0xff]
    %v164 = vld [vmem:[#allocation5 + $0x3a0] sm:$0xff]
    %v165 = vld [vmem:[#allocation5 + $0x3a8] sm:$0xff]
    %v166 = vld [vmem:[#allocation5 + $0x3b0] sm:$0xff]
    %v167 = vld [vmem:[#allocation5 + $0x3b8] sm:$0xff]
    %v168 = vld [vmem:[#allocation5 + $0x3c0] sm:$0xff]
    %v169 = vld [vmem:[#allocation5 + $0x3c8] sm:$0xff]
    %v170 = vld [vmem:[#allocation5 + $0x3d0] sm:$0xff]
    %v171 = vld [vmem:[#allocation5 + $0x3d8] sm:$0xff]
    %v172 = vld [vmem:[#allocation5 + $0x3e0] sm:$0xff]
    %v173 = vld [vmem:[#allocation5 + $0x3e8] sm:$0xff]
    %v174 = vld [vmem:[#allocation5 + $0x3f0] sm:$0xff]
    %v175 = vld [vmem:[#allocation5 + $0x3f8] sm:$0xff]
    %176 = vmatprep.subr.mxu0 %v49
    %177 = vmatpush1.xpose.msra.mxu0 %v48
    %178 = vmatprep.subr.mxu0 %v53
    %179 = vmatpush1.xpose.msra.mxu0 %v52
    %180 = vmatprep.subr.mxu0 %v57
    %181 = vmatpush1.xpose.msra.mxu0 %v56
    %182 = vmatprep.subr.mxu0 %v61
    %183 = vmatpush1.xpose.msra.mxu0 %v60
    %184 = vmatprep.subr.mxu0 %v65
    %185 = vmatpush1.xpose.msra.mxu0 %v64
    %186 = vmatprep.subr.mxu0 %v69
    %187 = vmatpush1.xpose.msra.mxu0 %v68
    %188 = vmatprep.subr.mxu0 %v73
    %189 = vmatpush1.xpose.msra.mxu0 %v72
    %190 = vmatprep.subr.mxu0 %v77
    %191 = vmatpush1.xpose.msra.mxu0 %v76
    %192 = vmatprep.subr.mxu0 %v81
    %193 = vmatpush1.xpose.msra.mxu0 %v80
    %194 = vmatprep.subr.mxu0 %v85
    %195 = vmatpush1.xpose.msra.mxu0 %v84
    %196 = vmatprep.subr.mxu0 %v89
    %197 = vmatpush1.xpose.msra.mxu0 %v88
    %198 = vmatprep.subr.mxu0 %v93
    %199 = vmatpush1.xpose.msra.mxu0 %v92
    %200 = vmatprep.subr.mxu0 %v97
    %201 = vmatpush1.xpose.msra.mxu0 %v96
    %202 = vmatprep.subr.mxu0 %v101
    %203 = vmatpush1.xpose.msra.mxu0 %v100
    %204 = vmatprep.subr.mxu0 %v105
    %205 = vmatpush1.xpose.msra.mxu0 %v104
    %206 = vmatprep.subr.mxu0 %v109
    %207 = vmatpush1.xpose.msra.mxu0 %v108
    %208 = vmatprep.subr.mxu0 %v113
    %209 = vmatpush1.xpose.msra.mxu0 %v112
    %210 = vmatprep.subr.mxu0 %v117
    %211 = vmatpush1.xpose.msra.mxu0 %v116
    %212 = vmatprep.subr.mxu0 %v121
    %213 = vmatpush1.xpose.msra.mxu0 %v120
    %214 = vmatprep.subr.mxu0 %v125
    %215 = vmatpush1.xpose.msra.mxu0 %v124
    %216 = vmatprep.subr.mxu0 %v129
    %217 = vmatpush1.xpose.msra.mxu0 %v128
    %218 = vmatprep.subr.mxu0 %v133
    %219 = vmatpush1.xpose.msra.mxu0 %v132
    %220 = vmatprep.subr.mxu0 %v137
    %221 = vmatpush1.xpose.msra.mxu0 %v136
    %222 = vmatprep.subr.mxu0 %v141
    %223 = vmatpush1.xpose.msra.mxu0 %v140
    %224 = vmatprep.subr.mxu0 %v145
    %225 = vmatpush1.xpose.msra.mxu0 %v144
    %226 = vmatprep.subr.mxu0 %v149
    %227 = vmatpush1.xpose.msra.mxu0 %v148
    %228 = vmatprep.subr.mxu0 %v153
    %229 = vmatpush1.xpose.msra.mxu0 %v152
    %230 = vmatprep.subr.mxu0 %v157
    %231 = vmatpush1.xpose.msra.mxu0 %v156
    %232 = vmatprep.subr.mxu0 %v161
    %233 = vmatpush1.xpose.msra.mxu0 %v160
    %234 = vmatprep.subr.mxu0 %v165
    %235 = vmatpush1.xpose.msra.mxu0 %v164
    %236 = vmatprep.subr.mxu0 %v169
    %237 = vmatpush1.xpose.msra.mxu0 %v168
    %238 = vmatprep.subr.mxu0 %v173
    %239 = vmatpush1.xpose.msra.mxu0 %v172
    %240 = vmatprep.mubr.f32.mxu0 %v41
    %241 = vmatmul.mubr.f32.gmra.mrb[0].mxu0 %v40
    %v242 = vpop.f32.mrb[0].mxu0
    %v243 = vadd.f32 0.0, %v242
    %v244 = vpop.f32.mrb[0].mxu0
    %v245 = vadd.f32 0.0, %v244
    %246 = vmatprep.mubr.f32.mxu0 %v45
    %247 = vmatmul.mubr.f32.gmra.mrb[0].mxu0 %v44
    %v248 = vpop.f32.mrb[0].mxu0
    %v249 = vadd.f32 0.0, %v248
    %v250 = vpop.f32.mrb[0].mxu0
    %v251 = vadd.f32 0.0, %v250
    %252 = vdwg.mxu0
    %253 = vmatprep.subr.mxu0 %v51
    %254 = vmatpush1.xpose.msra.mxu0 %v50
    %255 = vmatprep.subr.mxu0 %v55
    %256 = vmatpush1.xpose.msra.mxu0 %v54
    %257 = vmatprep.subr.mxu0 %v59
    %258 = vmatpush1.xpose.msra.mxu0 %v58
    %259 = vmatprep.subr.mxu0 %v63
    %260 = vmatpush1.xpose.msra.mxu0 %v62
    %261 = vmatprep.subr.mxu0 %v67
    %262 = vmatpush1.xpose.msra.mxu0 %v66
    %263 = vmatprep.subr.mxu0 %v71
    %264 = vmatpush1.xpose.msra.mxu0 %v70
    %265 = vmatprep.subr.mxu0 %v75
    %266 = vmatpush1.xpose.msra.mxu0 %v74
    %267 = vmatprep.subr.mxu0 %v79
    %268 = vmatpush1.xpose.msra.mxu0 %v78
    %269 = vmatprep.subr.mxu0 %v83
    %270 = vmatpush1.xpose.msra.mxu0 %v82
    %271 = vmatprep.subr.mxu0 %v87
    %272 = vmatpush1.xpose.msra.mxu0 %v86
    %273 = vmatprep.subr.mxu0 %v91
    %274 = vmatpush1.xpose.msra.mxu0 %v90
    %275 = vmatprep.subr.mxu0 %v95
    %276 = vmatpush1.xpose.msra.mxu0 %v94
    %277 = vmatprep.subr.mxu0 %v99
    %278 = vmatpush1.xpose.msra.mxu0 %v98
    %279 = vmatprep.subr.mxu0 %v103
    %280 = vmatpush1.xpose.msra.mxu0 %v102
    %281 = vmatprep.subr.mxu0 %v107
    %282 = vmatpush1.xpose.msra.mxu0 %v106
    %283 = vmatprep.subr.mxu0 %v111
    %284 = vmatpush1.xpose.msra.mxu0 %v110
    %285 = vmatprep.subr.mxu0 %v115
    %286 = vmatpush1.xpose.msra.mxu0 %v114
    %287 = vmatprep.subr.mxu0 %v119
    %288 = vmatpush1.xpose.msra.mxu0 %v118
    %289 = vmatprep.subr.mxu0 %v123
    %290 = vmatpush1.xpose.msra.mxu0 %v122
    %291 = vmatprep.subr.mxu0 %v127
    %292 = vmatpush1.xpose.msra.mxu0 %v126
    %293 = vmatprep.subr.mxu0 %v131
    %294 = vmatpush1.xpose.msra.mxu0 %v130
    %295 = vmatprep.subr.mxu0 %v135
    %296 = vmatpush1.xpose.msra.mxu0 %v134
    %297 = vmatprep.subr.mxu0 %v139
    %298 = vmatpush1.xpose.msra.mxu0 %v138
    %299 = vmatprep.subr.mxu0 %v143
    %300 = vmatpush1.xpose.msra.mxu0 %v142
    %301 = vmatprep.subr.mxu0 %v147
    %302 = vmatpush1.xpose.msra.mxu0 %v146
    %303 = vmatprep.subr.mxu0 %v151
    %304 = vmatpush1.xpose.msra.mxu0 %v150
    %305 = vmatprep.subr.mxu0 %v155
    %306 = vmatpush1.xpose.msra.mxu0 %v154
    %307 = vmatprep.subr.mxu0 %v159
    %308 = vmatpush1.xpose.msra.mxu0 %v158
    %309 = vmatprep.subr.mxu0 %v163
    %310 = vmatpush1.xpose.msra.mxu0 %v162
    %311 = vmatprep.subr.mxu0 %v167
    %312 = vmatpush1.xpose.msra.mxu0 %v166
    %313 = vmatprep.subr.mxu0 %v171
    %314 = vmatpush1.xpose.msra.mxu0 %v170
    %315 = vmatprep.subr.mxu0 %v175
    %316 = vmatpush1.xpose.msra.mxu0 %v174
    %317 = vmatprep.mubr.f32.mxu0 %v43
    %318 = vmatmul.mubr.f32.gmra.mrb[0].mxu0 %v42
    %v319 = vpop.f32.mrb[0].mxu0
    %v320 = vadd.f32 %v243, %v319
    %v321 = vpop.f32.mrb[0].mxu0
    %v322 = vadd.f32 %v245, %v321
    %323 = vmatprep.mubr.f32.mxu0 %v47
    %324 = vmatmul.mubr.f32.gmra.mrb[0].mxu0 %v46
    %v325 = vpop.f32.mrb[0].mxu0
    %v326 = vadd.f32 %v249, %v325
    %v327 = vpop.f32.mrb[0].mxu0
    %v328 = vadd.f32 %v251, %v327
    %329 = vdwg.mxu0
    %330 = vst [vmem:[#allocation7] sm:$0xff] %v320
    %331 = vst [vmem:[#allocation7 + $0x8] sm:$0xff] %v322
    %332 = vst [vmem:[#allocation7 + $0x10] sm:$0xff] %v326
    %333 = vst [vmem:[#allocation7 + $0x18] sm:$0xff] %v328
    // Predicated region
    $region18: #{tpu_custom_call.1} parent=1 // pred_check
      _
    $region19: #{tpu_custom_call.1} parent=1 // pred_check_branch
      %335 = sbr.rel (0) target = $region21
    $region20: #{tpu_custom_call.1} parent=1 // pred_region
      %s337 = ssub.s32 512, 512
      %338 = vsyncadd [#allocation4], %s337
      %s339 = sshll.u32 [#allocation7], 4
      %s340 = int_to_ptr.vmem [resolvable:$true] %s339
      %345 = dma.vmem_to_hbm [thread:$0]  %s340, 512, %s2, [#allocation4], 256, 256, 16
    $region21: #{tpu_custom_call.1} parent=1 // pred_fallthru
      _
    // Predicated region
    $region22: #{tpu_custom_call.1} parent=1 // pred_check
      _
    $region23: #{tpu_custom_call.1} parent=1 // pred_check_branch
      %347 = sbr.rel (0) target = $region25
    $region24: #{tpu_custom_call.1} parent=1 // pred_region
      %348 = dma.done [#allocation4], 512
    $region25: #{tpu_custom_call.1} parent=1 // pred_fallthru
      _
    %349 = vsyncpa [#allocation3], 1
    %350 = vsyncpa [#allocation6], 1
    %351 = vsyncpa [#allocation4], 1

</llo_original>
